<compile_context>
chip_gen: v5e
topology: v5e:2x2
jax: 0.10.0
libtpu: 0.0.40
codegen_flags: <defaults>
</compile_context>

<pallas_src>
import functools

import jax
import jax.numpy as jnp
from jax.experimental import pallas as pl
from jax.experimental.pallas import tpu as pltpu

LANES = 128
SUBLANES = 8


def _round_up(x, m):
    return (x + m - 1) // m * m


def _sublane_granule(dtype):
    bits = jnp.dtype(dtype).itemsize * 8
    if bits >= 32:
        return 8
    if bits == 16:
        return 16
    return 32


def _chip_config():
    """Per-generation tuning: block size, #TensorCores, VMEM limit, semantics."""
    kind = ""
    try:
        dev = jax.devices()[0]
        if dev.platform == "tpu":
            kind = dev.device_kind.lower()
    except Exception:
        pass
    cfg = dict(block_elems=256 * 1024, cores=1, vmem_limit=None,
               core_parallel=False, deep_pipeline=False)
    if not kind:
        return cfg
    if ("v5 lite" in kind or "v5e" in kind or "v5lite" in kind
            or "v2" in kind or "v3" in kind):
        # v5e & older: 16 MiB default scoped VMEM, slower HBM -> ~1 MiB f32 blocks.
        return cfg
    if "v6" in kind:
        # v6e: ~4 MiB f32 blocks; worst case ~24 MiB fits the 32 MiB default scope.
        cfg.update(block_elems=1024 * 1024)
        return cfg
    if "v4" in kind or "v5p" in kind or "v5" in kind:
        # Megacore chips: a leading "parallel" axis already shards across 2 TCs.
        cfg.update(block_elems=1024 * 1024, cores=2, vmem_limit=40 << 20)
        return cfg
    # Unknown / newer (v7x-class): 2 TCs/chip, faster HBM, 64 MiB physical VMEM.
    cfg.update(block_elems=1024 * 1024, cores=2, vmem_limit=40 << 20,
               core_parallel=True, deep_pipeline=True)
    return cfg


def _mosaic_params(dim_sem, vmem_limit):
    kwargs = dict(dimension_semantics=dim_sem)
    if vmem_limit is not None:
        kwargs["vmem_limit_bytes"] = int(vmem_limit)
    return pltpu.CompilerParams(**kwargs)


def _layout(n, max_block_elems, granule):
    """Lane-dense (rows, wide) layout + row-tile size for an n-element slab."""
    wide = None
    for cand in (2048, 1024, 512, 256, 128):
        if n % cand == 0 and n // cand >= granule:
            wide = cand
            break
    if wide is None:
        wide = LANES          # n is a multiple of 128 by construction
        granule = SUBLANES    # small slab: minimal legal tiling
    rows = n // wide
    tile_rows = min(_round_up(rows, granule),
                    max(granule, _round_up(max_block_elems // wide, granule)))
    return wide, rows, tile_rows


def _phuber_val(x, t, beta):
    # Stable rewrite of beta**2 * (sqrt(((x-t)/beta)**2 + 1) - 1):
    #   |b| * d^2 / (sqrt(d^2 + b^2) + |b|)
    # TODO(synk): beta == 0 returns 0 (NaN at d == 0) here, while the PyTorch
    # reference divides by beta and yields Inf/NaN; not special-cased.
    d = x - t
    b = abs(beta)
    d2 = d * d
    return (b * d2) / (jnp.sqrt(d2 + b * b) + b)


def _phuber_val_jnp(x, t, beta):
    return _phuber_val(x.astype(jnp.float32), t.astype(jnp.float32), beta)


def _phuber_sum_kernel(x_ref, t_ref, o_ref, *, beta, tile_rows, wide,
                       total_rows, steps, first_masked_tile, any_mask):
    s = pl.program_id(0)
    i = pl.program_id(1)

    @pl.when(i == 0)
    def _():
        o_ref[...] = jnp.zeros_like(o_ref)

    x = x_ref[...].astype(jnp.float32)
    t = t_ref[...].astype(jnp.float32)
    val = _phuber_val(x, t, beta)
    groups = tile_rows // SUBLANES

    def accumulate(v):
        # vreg-aligned partial: (tile_rows, wide) -> (8, wide) via sublane-tile
        # aligned vector adds; no per-step cross-lane reduce.
        o_ref[...] += v.reshape(groups, SUBLANES, wide).sum(axis=0)

    if any_mask:
        gtile = s * steps + i
        needs_mask = gtile >= first_masked_tile

        @pl.when(needs_mask)
        def _():
            row0 = gtile * tile_rows
            row_ids = row0 + jax.lax.broadcasted_iota(jnp.int32, (tile_rows, 1), 0)
            accumulate(jnp.where(row_ids < total_rows, val, 0.0))

        @pl.when(jnp.logical_not(needs_mask))
        def _():
            accumulate(val)
    else:
        accumulate(val)


def _phuber_map_kernel(x_ref, t_ref, o_ref, *, beta):
    x = x_ref[...].astype(jnp.float32)
    t = t_ref[...].astype(jnp.float32)
    o_ref[...] = _phuber_val(x, t, beta).astype(o_ref.dtype)


def pseudo_huber_loss(inputs, target, beta=1.0, reduction="mean",
                      max_block_elems=None):
    """Matches PseudoHuberLoss.forward semantics ('mean' / 'sum' / 'none')."""
    if reduction not in ("mean", "sum", "none"):
        raise ValueError(f"unknown reduction {reduction!r}")
    beta = float(beta)
    n = int(inputs.size)
    cfg = _chip_config()
    if max_block_elems is None:
        max_block_elems = cfg["block_elems"]
    granule = max(_sublane_granule(inputs.dtype), _sublane_granule(target.dtype))

    x_flat = inputs.reshape(-1)
    t_flat = target.reshape(-1)
    n_tail = n % LANES
    n_main = n - n_tail

    # Tiny inputs: per-step overhead dominates; just do it in plain jnp.
    if n_main < SUBLANES * LANES:
        out_full = _phuber_val_jnp(x_flat, t_flat, beta)
        if reduction == "none":
            return out_full.astype(inputs.dtype).reshape(inputs.shape)
        total = jnp.sum(out_full, dtype=jnp.float32)
        return total if reduction == "sum" else total / float(n)

    wide, rows, tile_rows = _layout(n_main, max_block_elems, granule)
    x2d = x_flat[:n_main].reshape(rows, wide)
    t2d = t_flat[:n_main].reshape(rows, wide)
    num_tiles = pl.cdiv(rows, tile_rows)

    if reduction == "none":
        out2d = pl.pallas_call(
            functools.partial(_phuber_map_kernel, beta=beta),
            out_shape=jax.ShapeDtypeStruct((rows, wide), inputs.dtype),
            grid=(num_tiles,),
            in_specs=[pl.BlockSpec((tile_rows, wide), lambda i: (i, 0)),
                      pl.BlockSpec((tile_rows, wide), lambda i: (i, 0))],
            out_specs=pl.BlockSpec((tile_rows, wide), lambda i: (i, 0)),
            compiler_params=_mosaic_params((pltpu.PARALLEL,), cfg["vmem_limit"]),
        )(x2d, t2d)
        out_flat = out2d.reshape(-1)
        if n_tail:
            tail = _phuber_val_jnp(x_flat[n_main:], t_flat[n_main:],
                                   beta).astype(inputs.dtype)
            out_flat = jnp.concatenate([out_flat, tail])
        return out_flat.reshape(inputs.shape)

    # --- sum / mean ---------------------------------------------------------
    nsplit = cfg["cores"] if (cfg["cores"] > 1 and num_tiles > 1) else 1
    steps = pl.cdiv(num_tiles, nsplit)
    last_real = num_tiles - 1
    first_masked_tile = num_tiles - 1 if (rows % tile_rows) else num_tiles
    any_mask = (nsplit * steps) > first_masked_tile

    lead_sem = pltpu.PARALLEL
    if nsplit > 1 and cfg["core_parallel"]:
        lead_sem = getattr(pltpu, "CORE_PARALLEL", pltpu.PARALLEL)

    def in_map(s, i):
        # Clamp: duplicated tiles (odd tile count split over 2 cores) are read
        # from the last real tile and fully zeroed by the row mask.
        return (jnp.minimum(s * steps + i, last_real), 0)

    in_spec = pl.BlockSpec((tile_rows, wide), in_map)
    if cfg["deep_pipeline"] and hasattr(pl, "Buffered"):
        try:
            in_spec = pl.BlockSpec((tile_rows, wide), in_map,
                                   pipeline_mode=pl.Buffered(3))
        except TypeError:
            pass  # older BlockSpec signature: keep default double-buffering

    partials = pl.pallas_call(
        functools.partial(_phuber_sum_kernel, beta=beta, tile_rows=tile_rows,
                          wide=wide, total_rows=rows, steps=steps,
                          first_masked_tile=first_masked_tile,
                          any_mask=any_mask),
        out_shape=jax.ShapeDtypeStruct((nsplit * SUBLANES, wide), jnp.float32),
        grid=(nsplit, steps),
        in_specs=[in_spec, in_spec],
        out_specs=pl.BlockSpec((SUBLANES, wide), lambda s, i: (s, 0)),
        compiler_params=_mosaic_params((lead_sem, pltpu.ARBITRARY),
                                       cfg["vmem_limit"]),
    )(x2d, t2d)

    # TODO(synk): final cross-lane reduce could be folded into the kernel
    # epilogue (SMEM scalar output) to save one tiny wrapper-side XLA reduce.
    total = jnp.sum(partials, dtype=jnp.float32)
    if n_tail:
        total = total + jnp.sum(
            _phuber_val_jnp(x_flat[n_main:], t_flat[n_main:], beta),
            dtype=jnp.float32)
    if reduction == "sum":
        return total
    return total / float(n)


def _reference(inputs, target, beta=1.0, reduction="mean"):
    d = (inputs.astype(jnp.float32) - target.astype(jnp.float32)) / beta
    out = (beta ** 2) * (jnp.sqrt(d * d + 1.0) - 1.0)
    if reduction == "mean":
        return jnp.mean(out)
    if reduction == "sum":
        return jnp.sum(out)
    return out


if __name__ == "__main__":
    key = jax.random.PRNGKey(0)
    k1, k2 = jax.random.split(key)
    # Module has no weights; NCHW-shaped prediction/target pair.
    x = jax.random.normal(k1, (2, 4, 16, 16), dtype=jnp.float32)
    t = jax.random.normal(k2, (2, 4, 16, 16), dtype=jnp.float32)

    loss = jax.block_until_ready(pseudo_huber_loss(x, t, beta=1.0, reduction="mean"))
    ref = _reference(x, t, beta=1.0, reduction="mean")
    assert jnp.allclose(loss, ref, rtol=1e-5, atol=1e-5), (loss, ref)

    s = jax.block_until_ready(pseudo_huber_loss(x, t, beta=2.0, reduction="sum"))
    assert jnp.allclose(s, _reference(x, t, beta=2.0, reduction="sum"),
                        rtol=1e-5, atol=1e-3)

    e = jax.block_until_ready(pseudo_huber_loss(x, t, beta=0.5, reduction="none"))
    assert jnp.allclose(e, _reference(x, t, beta=0.5, reduction="none"),
                        rtol=1e-5, atol=1e-5)
    assert e.shape == x.shape and e.dtype == x.dtype

    # Unaligned numel: kernel handles the 128-aligned prefix, jnp handles tail.
    k3, k4 = jax.random.split(k2)
    xo = jax.random.normal(k3, (2, 3, 11, 16), dtype=jnp.float32)
    to = jax.random.normal(k4, (2, 3, 11, 16), dtype=jnp.float32)
    m1 = jax.block_until_ready(pseudo_huber_loss(xo, to, beta=1.5, reduction="mean"))
    assert jnp.allclose(m1, _reference(xo, to, beta=1.5, reduction="mean"),
                        rtol=1e-5, atol=1e-5)

    # Multi-tile reduction with a partial (masked) last tile.
    k5, k6 = jax.random.split(k4)
    xl = jax.random.normal(k5, (2, 3, 16, 24), dtype=jnp.float32)
    tl = jax.random.normal(k6, (2, 3, 16, 24), dtype=jnp.float32)
    m2 = jax.block_until_ready(
        pseudo_huber_loss(xl, tl, beta=1.0, reduction="sum", max_block_elems=2048))
    assert jnp.allclose(m2, _reference(xl, tl, beta=1.0, reduction="sum"),
                        rtol=1e-5, atol=1e-3)

    # Multi-step sequential accumulation into the resident output block.
    k7, k8 = jax.random.split(k6)
    xm = jax.random.normal(k7, (2, 4, 32, 33), dtype=jnp.float32)
    tm = jax.random.normal(k8, (2, 4, 32, 33), dtype=jnp.float32)
    m3 = jax.block_until_ready(
        pseudo_huber_loss(xm, tm, beta=0.7, reduction="mean", max_block_elems=2048))
    assert jnp.allclose(m3, _reference(xm, tm, beta=0.7, reduction="mean"),
                        rtol=1e-5, atol=1e-5)

    # bf16 inputs exercise the dtype-aware (16-row) sublane tiling.
    k9, k10 = jax.random.split(k8)
    xb = jax.random.normal(k9, (2, 4, 16, 16), dtype=jnp.bfloat16)
    tb = jax.random.normal(k10, (2, 4, 16, 16), dtype=jnp.bfloat16)
    mb = jax.block_until_ready(pseudo_huber_loss(xb, tb, beta=1.0, reduction="mean"))
    assert jnp.allclose(mb, _reference(xb, tb, beta=1.0, reduction="mean"),
                        rtol=1e-4, atol=1e-4)

    print("KERNEL_OK")
</pallas_src>

<mosaic_0001>
module attributes {stable_mosaic.version = 11 : i64} {
  func.func @_phuber_sum_kernel(%arg0: i32, %arg1: i32, %arg2: memref<8x256xf32, #tpu.memory_space<vmem>>, %arg3: memref<8x256xf32, #tpu.memory_space<vmem>>, %arg4: memref<8x256xf32, #tpu.memory_space<vmem>>) attributes {dimension_semantics = [#tpu.dimension_semantics<parallel>, #tpu.dimension_semantics<arbitrary>], iteration_bounds = array<i64: 1, 1>, scalar_prefetch = 0 : i64, scratch_operands = 0 : i64, tpu.core_type = #tpu.core_type<tc>, window_params = [{transform_indices = @transform_0, window_bounds = array<i64: 8, 256>}, {transform_indices = @transform_1, window_bounds = array<i64: 8, 256>}, {transform_indices = @transform_2, window_bounds = array<i64: 8, 256>}]} {
    %c0_i32 = arith.constant 0 : i32
    %0 = arith.cmpi eq, %arg1, %c0_i32 : i32
    %1 = arith.extui %0 : i1 to i32
    %c0_i32_0 = arith.constant 0 : i32
    %2 = arith.cmpi ne, %1, %c0_i32_0 : i32
    scf.if %2 {
      %cst_11 = arith.constant 0.000000e+00 : f32
      %20 = vector.broadcast %cst_11 : f32 to vector<8x256xf32>
      %c0_12 = arith.constant 0 : index
      %c0_13 = arith.constant 0 : index
      %21 = vector.load %arg4[%c0_12, %c0_13] : memref<8x256xf32, #tpu.memory_space<vmem>>, vector<8x256xf32>
      tpu.vector_store %arg4[%c0_12, %c0_13], %20 {strides = array<i32>} : memref<8x256xf32, #tpu.memory_space<vmem>>, vector<8x256xf32>,
    } else {
    }
    %c0 = arith.constant 0 : index
    %c0_1 = arith.constant 0 : index
    %3 = vector.load %arg2[%c0, %c0_1] : memref<8x256xf32, #tpu.memory_space<vmem>>, vector<8x256xf32>
    %c0_2 = arith.constant 0 : index
    %c0_3 = arith.constant 0 : index
    %4 = vector.load %arg3[%c0_2, %c0_3] : memref<8x256xf32, #tpu.memory_space<vmem>>, vector<8x256xf32>
    %5 = arith.subf %3, %4 : vector<8x256xf32>
    %6 = arith.mulf %5, %5 : vector<8x256xf32>
    %cst = arith.constant 1.000000e+00 : f32
    %7 = vector.broadcast %cst : f32 to vector<8x256xf32>
    %8 = arith.mulf %7, %6 : vector<8x256xf32>
    %cst_4 = arith.constant 1.000000e+00 : f32
    %9 = vector.broadcast %cst_4 : f32 to vector<8x256xf32>
    %10 = arith.addf %6, %9 : vector<8x256xf32>
    %11 = math.sqrt %10 : vector<8x256xf32>
    %cst_5 = arith.constant 1.000000e+00 : f32
    %12 = vector.broadcast %cst_5 : f32 to vector<8x256xf32>
    %13 = arith.addf %11, %12 : vector<8x256xf32>
    %14 = arith.divf %8, %13 : vector<8x256xf32>
    %c0_6 = arith.constant 0 : index
    %c0_7 = arith.constant 0 : index
    %15 = vector.load %arg4[%c0_6, %c0_7] : memref<8x256xf32, #tpu.memory_space<vmem>>, vector<8x256xf32>
    %16 = vector.shape_cast %14 : vector<8x256xf32> to vector<1x8x256xf32>
    %cst_8 = arith.constant dense<0.000000e+00> : vector<8x256xf32>
    %17 = vector.multi_reduction <add>, %16, %cst_8 [0] : vector<1x8x256xf32> to vector<8x256xf32>
    %18 = arith.addf %15, %17 : vector<8x256xf32>
    %c0_9 = arith.constant 0 : index
    %c0_10 = arith.constant 0 : index
    %19 = vector.load %arg4[%c0_9, %c0_10] : memref<8x256xf32, #tpu.memory_space<vmem>>, vector<8x256xf32>
    tpu.vector_store %arg4[%c0_9, %c0_10], %18 {strides = array<i32>} : memref<8x256xf32, #tpu.memory_space<vmem>>, vector<8x256xf32>,
    return
  }
  func.func @transform_0(%arg0: i32, %arg1: i32) -> (i32, i32) {
    %c1_i32 = arith.constant 1 : i32
    %0 = arith.muli %arg0, %c1_i32 : i32
    %1 = arith.addi %0, %arg1 : i32
    %c0_i32 = arith.constant 0 : i32
    %2 = arith.minsi %1, %c0_i32 : i32
    %c0_i32_0 = arith.constant 0 : i32
    %c0_i32_1 = arith.constant 0 : i32
    return %2, %c0_i32_0 : i32, i32
  }
  func.func @transform_1(%arg0: i32, %arg1: i32) -> (i32, i32) {
    %c1_i32 = arith.constant 1 : i32
    %0 = arith.muli %arg0, %c1_i32 : i32
    %1 = arith.addi %0, %arg1 : i32
    %c0_i32 = arith.constant 0 : i32
    %2 = arith.minsi %1, %c0_i32 : i32
    %c0_i32_0 = arith.constant 0 : i32
    %c0_i32_1 = arith.constant 0 : i32
    return %2, %c0_i32_0 : i32, i32
  }
  func.func @transform_2(%arg0: i32, %arg1: i32) -> (i32, i32) {
    %c0_i32 = arith.constant 0 : i32
    %c0_i32_0 = arith.constant 0 : i32
    return %arg0, %c0_i32 : i32, i32
  }
}

</mosaic_0001>

<llo_original>
// kernel: tpu_custom_call.1
$region0: #{tpu_custom_call.1}
  #allocation0 [shape = 'u32[]', space=smem, size = 0x4, offset = 0x4, fixed_abs, tag = 'smem constant byte address 0x4 - core index']
  #allocation1 [shape = 'u32[72,128]{1,0:T(1,128)}', space=vmem, size = 0x9000, scoped, tag = 'internal scratch']
  %s0 = inlined_call_operand.hbm [shape: f32[8,256], index: 0, kind: input, shape index: {}]
  %s1 = inlined_call_operand.hbm [shape: f32[8,256], index: 1, kind: input, shape index: {}]
  %s2 = inlined_call_operand.hbm [shape: f32[8,256], index: 2, kind: output, shape index: {}]
  %s3 = sld [smem:[#allocation0]]
  $region30: #{tpu_custom_call.1} parent=0
    _
  %s5 = ssub.s32 1, %s3
  %s6 = scalar_select 0, %s5, %s3
  $region1: #{tpu_custom_call.1} parent=0
    #allocation2 [shape = 'u8[8192]{0}', space=vmem, size = 0x2000, scoped, tag = 'input window, operand 0, single buffered']
    #allocation3 [shape = 's32[1]{0}', space=sflag, size = 0x4, scoped, tag = 'scoped memory for tpu_custom_call.1']
    #allocation4 [shape = 's32[1]{0}', space=sflag, size = 0x4, scoped, tag = 'scoped memory for tpu_custom_call.1']
    #allocation5 [shape = 'u8[8192]{0}', space=vmem, size = 0x2000, scoped, tag = 'input window, operand 1, single buffered']
    #allocation6 [shape = 's32[1]{0}', space=sflag, size = 0x4, scoped, tag = 'scoped memory for tpu_custom_call.1']
    #allocation7 [shape = 'u8[8192]{0}', space=vmem, size = 0x2000, scoped, tag = 'output window, operand 0, single buffered']
    %7 = vsyncpa [#allocation3], 0
    %8 = vsyncpa [#allocation6], 0
    %9 = vsyncpa [#allocation4], 0
    // Predicated region
    $region2: #{tpu_custom_call.1} parent=1 // pred_check
      _
    $region3: #{tpu_custom_call.1} parent=1 // pred_check_branch
      %11 = sbr.rel (0) target = $region5
    $region4: #{tpu_custom_call.1} parent=1 // pred_region
      %s12 = sadd.s32 0, 0
      %p13 = scmp.lt.s32.totalorder %s12, 0
      %s14 = scalar_select %p13, %s12, 0
      %16 = vsyncadd [#allocation3], 0
      %s17 = smul.addr %s14, 2
      %s18 = smul.addr %s17, 8
      %s19 = scalar_lea.hbm %s0, %s18
      %s21 = sshll.u32 %s19, 4
      %s22 = int_to_ptr.hbm [resolvable:$true] %s21
      %s23 = sshll.u32 [#allocation2], 4
      %s24 = int_to_ptr.vmem [resolvable:$true] %s23
      %26 = dma.hbm_to_vmem [thread:$0]  %s22, 256, %s24, [#allocation3]
    $region5: #{tpu_custom_call.1} parent=1 // pred_fallthru
      _
    // Predicated region
    $region6: #{tpu_custom_call.1} parent=1 // pred_check
      _
    $region7: #{tpu_custom_call.1} parent=1 // pred_check_branch
      %28 = sbr.rel (0) target = $region9
    $region8: #{tpu_custom_call.1} parent=1 // pred_region
      %s29 = sadd.s32 0, 0
      %p30 = scmp.lt.s32.totalorder %s29, 0
      %s31 = scalar_select %p30, %s29, 0
      %33 = vsyncadd [#allocation6], 0
      %s34 = smul.addr %s31, 2
      %s35 = smul.addr %s34, 8
      %s36 = scalar_lea.hbm %s1, %s35
      %s38 = sshll.u32 %s36, 4
      %s39 = int_to_ptr.hbm [resolvable:$true] %s38
      %s40 = sshll.u32 [#allocation5], 4
      %s41 = int_to_ptr.vmem [resolvable:$true] %s40
      %43 = dma.hbm_to_vmem [thread:$0]  %s39, 256, %s41, [#allocation6]
    $region9: #{tpu_custom_call.1} parent=1 // pred_fallthru
      _
    // Predicated region
    $region10: #{tpu_custom_call.1} parent=1 // pred_check
      _
    $region11: #{tpu_custom_call.1} parent=1 // pred_check_branch
      %45 = sbr.rel (0) target = $region13
    $region12: #{tpu_custom_call.1} parent=1 // pred_region
      %47 = dma.done [#allocation3], 256
    $region13: #{tpu_custom_call.1} parent=1 // pred_fallthru
      _
    // Predicated region
    $region14: #{tpu_custom_call.1} parent=1 // pred_check
      _
    $region15: #{tpu_custom_call.1} parent=1 // pred_check_branch
      %49 = sbr.rel (0) target = $region17
    $region16: #{tpu_custom_call.1} parent=1 // pred_region
      %51 = dma.done [#allocation6], 256
    $region17: #{tpu_custom_call.1} parent=1 // pred_fallthru
      _
    %s52 = sadd.s32 0, 0
    %p53 = scmp.lt.s32.totalorder %s52, 0
    %s54 = scalar_select %p53, %s52, 0
    %s55 = sadd.s32 0, 0
    %p56 = scmp.lt.s32.totalorder %s55, 0
    %s57 = scalar_select %p56, %s55, 0
    %p58 = scmp.eq.s32.totalorder 0, 0
    // Predicated region
    $region18: #{tpu_custom_call.1} parent=1 // pred_check
      %p59 = pneg %p58
    $region19: #{tpu_custom_call.1} parent=1 // pred_check_branch
      %61 = sbr.rel (%p59) target = $region21
    $region20: #{tpu_custom_call.1} parent=1 // pred_region
      %62 = vst [vmem:[#allocation7] sm:$0xff] 0.0
      %63 = vst [vmem:[#allocation7 + $0x8] sm:$0xff] 0.0
    $region21: #{tpu_custom_call.1} parent=1 // pred_fallthru
      _
    %v64 = vld [vmem:[#allocation2] sm:$0xff]
    %v65 = vld [vmem:[#allocation2 + $0x8] sm:$0xff]
    %v66 = vld [vmem:[#allocation5] sm:$0xff]
    %v67 = vld [vmem:[#allocation5 + $0x8] sm:$0xff]
    %v68 = vsub.f32 %v64, %v66
    %v69 = vsub.f32 %v65, %v67
    %v70 = vmul.f32 %v68, %v68
    %v71 = vmul.f32 %v69, %v69
    %v72 = vadd.f32 %v70, 1.0
    %v73 = vadd.f32 %v71, 1.0
    %v74 = vrsqrt.pop %v72
    %v75 = vmul.f32 %v74, %v72
    %v76 = vmul.f32 %v75, %v74
    %v77 = vmul.f32 0.5, %v76
    %v78 = vsub.f32 1.5, %v77
    %v79 = vmul.f32 %v74, %v78
    %v80 = vmul.f32 %v72, %v79
    %vm81 = vcmp.eq.f32.partialorder %v72, inf
    %v82 = vsel %vm81, %v72, %v80
    %vm83 = vcmp.eq.f32.partialorder %v72, 0.0
    %v84 = vand.u32 %v72, 2147483648
    %v85 = vsel %vm83, %v84, %v82
    %v86 = vrsqrt.pop %v73
    %v87 = vmul.f32 %v86, %v73
    %v88 = vmul.f32 %v87, %v86
    %v89 = vmul.f32 0.5, %v88
    %v90 = vsub.f32 1.5, %v89
    %v91 = vmul.f32 %v86, %v90
    %v92 = vmul.f32 %v73, %v91
    %vm93 = vcmp.eq.f32.partialorder %v73, inf
    %v94 = vsel %vm93, %v73, %v92
    %vm95 = vcmp.eq.f32.partialorder %v73, 0.0
    %v96 = vand.u32 %v73, 2147483648
    %v97 = vsel %vm95, %v96, %v94
    %v98 = vadd.f32 %v85, 1.0
    %v99 = vadd.f32 %v97, 1.0
    %v100 = vrcp.pop %v98
    %v101 = vmul.f32 %v98, %v100
    %v102 = vsub.f32 1.0, %v101
    %v103 = vmul.f32 %v100, %v102
    %v104 = vadd.f32 %v100, %v103
    %vm105 = vweird.f32 %v98
    %vm106 = vweird.f32 %v100
    %vm107 = vmor %vm105, %vm106
    %v108 = vsel %vm107, %v100, %v104
    %v109 = vand.u32 2147483647, %v98
    %vm110 = vcmp.eq.f32.partialorder %v109, 8.507059e+37
    %v111 = vand.u32 %v98, 2147483648
    %v112 = vor.u32 1.1754944e-38, %v111
    %v113 = vsel %vm110, %v112, %v108
    %v114 = vmul.f32 %v70, %v113
    %v115 = vrcp.pop %v99
    %v116 = vmul.f32 %v99, %v115
    %v117 = vsub.f32 1.0, %v116
    %v118 = vmul.f32 %v115, %v117
    %v119 = vadd.f32 %v115, %v118
    %vm120 = vweird.f32 %v99
    %vm121 = vweird.f32 %v115
    %vm122 = vmor %vm120, %vm121
    %v123 = vsel %vm122, %v115, %v119
    %v124 = vand.u32 2147483647, %v99
    %vm125 = vcmp.eq.f32.partialorder %v124, 8.507059e+37
    %v126 = vand.u32 %v99, 2147483648
    %v127 = vor.u32 1.1754944e-38, %v126
    %v128 = vsel %vm125, %v127, %v123
    %v129 = vmul.f32 %v71, %v128
    %v130 = vld [vmem:[#allocation7] sm:$0xff]
    %v131 = vld [vmem:[#allocation7 + $0x8] sm:$0xff]
    %v132 = vadd.f32 %v114, 0.0
    %v133 = vadd.f32 %v129, 0.0
    %v134 = vadd.f32 %v130, %v132
    %v135 = vadd.f32 %v131, %v133
    %136 = vst [vmem:[#allocation7] sm:$0xff] %v134
    %137 = vst [vmem:[#allocation7 + $0x8] sm:$0xff] %v135
    // Predicated region
    $region22: #{tpu_custom_call.1} parent=1 // pred_check
      _
    $region23: #{tpu_custom_call.1} parent=1 // pred_check_branch
      %139 = sbr.rel (0) target = $region25
    $region24: #{tpu_custom_call.1} parent=1 // pred_region
      %141 = vsyncadd [#allocation4], 0
      %s143 = sshll.u32 [#allocation7], 4
      %s144 = int_to_ptr.vmem [resolvable:$true] %s143
      %s145 = sshll.u32 %s2, 4
      %s146 = int_to_ptr.hbm [resolvable:$true] %s145
      %148 = dma.vmem_to_hbm [thread:$0]  %s144, 256, %s146, [#allocation4]
    $region25: #{tpu_custom_call.1} parent=1 // pred_fallthru
      _
    // Predicated region
    $region26: #{tpu_custom_call.1} parent=1 // pred_check
      _
    $region27: #{tpu_custom_call.1} parent=1 // pred_check_branch
      %150 = sbr.rel (0) target = $region29
    $region28: #{tpu_custom_call.1} parent=1 // pred_region
      %152 = dma.done [#allocation4], 256
    $region29: #{tpu_custom_call.1} parent=1 // pred_fallthru
      _
    %153 = vsyncpa [#allocation3], 1
    %154 = vsyncpa [#allocation6], 1
    %155 = vsyncpa [#allocation4], 1

</llo_original>
